<compile_context>
chip_gen: v7x
topology: tpu7x:2x2x1
jax: 0.10.0
libtpu: 0.0.40
codegen_flags: <defaults>
</compile_context>

<pallas_src>
import functools
import math

import jax
import jax.numpy as jnp
from jax.experimental import pallas as pl
from jax.experimental.pallas import tpu as pltpu


HIDDEN = 64            # per-network hidden width (matches the PyTorch module)
FUSED_H = 2 * HIDDEN   # fused actor||critic hidden width (lane-dense: 128)


def _round_up(x, m):
    return ((x + m - 1) // m) * m


# ----------------------------------------------------------------------------
# Pallas kernel: fused actor + critic forward pass (3 lane-dense bf16 matmuls)
# ----------------------------------------------------------------------------
def actor_critic_kernel(action_dim,
                        x_ref, w1_ref, b1_ref, w2_ref, b2_ref, w3_ref, b3_ref,
                        out_ref):
    x = x_ref[...]                                         # bf16 [TB, S]

    # layer 1 + 2 (layer 2 is block-diag actor/critic); bf16 operands, f32 acc
    h = jnp.tanh(jnp.dot(x, w1_ref[...], preferred_element_type=jnp.float32)
                 + b1_ref[...])
    h = jnp.tanh(jnp.dot(h.astype(jnp.bfloat16), w2_ref[...],
                         preferred_element_type=jnp.float32) + b2_ref[...])

    # fused layer 3: lanes [0, A) = actor logits, lane A = critic value,
    # remaining lanes are zero-padded.
    z = jnp.dot(h.astype(jnp.bfloat16), w3_ref[...],
                preferred_element_type=jnp.float32) + b3_ref[...]

    # masked, numerically-stable log-softmax over the logit lanes only (f32)
    col = jax.lax.broadcasted_iota(jnp.int32, z.shape, 1)
    is_logit = col < action_dim
    masked = jnp.where(is_logit, z, jnp.float32(-1e30))
    m = jnp.max(masked, axis=-1, keepdims=True)
    e = jnp.exp(masked - m)                       # padded lanes underflow to 0
    denom = jnp.sum(e, axis=-1, keepdims=True)
    logp = masked - m - jnp.log(denom)

    # fused evaluate() epilogue: Categorical entropy = -sum p*logp
    p = e * pl.reciprocal(denom, approx=True)
    entropy = -jnp.sum(jnp.where(is_logit, p * logp, 0.0),
                       axis=-1, keepdims=True)

    # single lane-dense store: log-probs | value (raw z) | entropy | zeros
    res = jnp.where(is_logit, logp, z)
    res = jnp.where(col == action_dim + 1, entropy, res)
    out_ref[...] = res.astype(out_ref.dtype)
    # TODO(synk): optionally pass action ids (SMEM int32) and gather the chosen
    # log-prob in-kernel via iota-compare + lane-sum into another spare lane.


# ----------------------------------------------------------------------------
# pallas_call wrapper: batch-tiled grid, VMEM-resident fused weights
# ----------------------------------------------------------------------------
def _run_kernel(state, packed, block_b=1024):
    B, S = state.shape
    action_dim = packed["action_dim"]
    out_w = packed["out_w"]

    # bf16 input streaming (matmul operands are bf16 inside anyway)
    state = state.astype(jnp.bfloat16)

    # batch tile: multiple of 8 sublanes, capped by block_b.  For large batches
    # keep >=2 grid steps so "parallel" can shard across v7x's two TensorCores
    # (harmless on v5e/v6e).  No input padding / output slicing: the ragged
    # last block is masked by the Pallas pipeline.
    block_b = max(8, _round_up(block_b, 8))
    Bp = _round_up(B, 8)
    TB = min(block_b, Bp)
    if Bp >= 512 and pl.cdiv(Bp, TB) < 2:
        TB = _round_up(pl.cdiv(Bp, 2), 8)
    grid = (pl.cdiv(B, TB),)

    flops = 2 * B * (S * FUSED_H + FUSED_H * FUSED_H + FUSED_H * out_w)
    bytes_accessed = (B * S * 2 + B * out_w * 4            # activations in/out
                      + (S + FUSED_H) * FUSED_H * 2 + FUSED_H * out_w * 2
                      + (2 * FUSED_H + out_w) * 4)          # weights + biases
    cost = pl.CostEstimate(flops=int(flops),
                           transcendentals=int(B * (2 * FUSED_H + out_w + 2)),
                           bytes_accessed=int(bytes_accessed))

    kernel = functools.partial(actor_critic_kernel, action_dim)
    out = pl.pallas_call(
        kernel,
        out_shape=jax.ShapeDtypeStruct((B, out_w), jnp.float32),
        grid_spec=pltpu.PrefetchScalarGridSpec(
            num_scalar_prefetch=0,
            grid=grid,
            in_specs=[
                pl.BlockSpec((TB, S), lambda i: (i, 0)),            # state tile
                pl.BlockSpec((S, FUSED_H), lambda i: (0, 0)),       # W1 (resident)
                pl.BlockSpec((1, FUSED_H), lambda i: (0, 0)),       # b1
                pl.BlockSpec((FUSED_H, FUSED_H), lambda i: (0, 0)), # W2
                pl.BlockSpec((1, FUSED_H), lambda i: (0, 0)),       # b2
                pl.BlockSpec((FUSED_H, out_w), lambda i: (0, 0)),   # W3
                pl.BlockSpec((1, out_w), lambda i: (0, 0)),         # b3
            ],
            out_specs=pl.BlockSpec((TB, out_w), lambda i: (i, 0)),
        ),
        compiler_params=pltpu.CompilerParams(
            dimension_semantics=("parallel",)),   # batch axis -> v7x megacore
        cost_estimate=cost,
    )(state, packed["w1"], packed["b1"], packed["w2"], packed["b2"],
      packed["w3"], packed["b3"])
    return out


def forward_all(state, packed, block_b=1024):
    """Returns (log_probs [B, A], state_values [B, 1], entropy [B])."""
    out = _run_kernel(state, packed, block_b)
    ad = packed["action_dim"]
    log_probs = out[:, :ad]
    values = out[:, ad:ad + 1]
    entropy = out[:, ad + 1]
    return log_probs, values, entropy


def actor_critic_forward(state, packed, block_b=1024):
    """Returns (log_probs [B, A], state_values [B, 1])."""
    log_probs, values, _ = forward_all(state, packed, block_b)
    return log_probs, values


# ----------------------------------------------------------------------------
# Parameter init (PyTorch nn.Linear-style uniform bounds) + fusion packing
# ----------------------------------------------------------------------------
def init_params(key, state_dim, action_dim, hidden=HIDDEN):
    def linear(key, fan_in, fan_out):
        kw, kb = jax.random.split(key)
        bound = 1.0 / math.sqrt(fan_in)
        w = jax.random.uniform(kw, (fan_in, fan_out), jnp.float32, -bound, bound)
        b = jax.random.uniform(kb, (1, fan_out), jnp.float32, -bound, bound)
        return w, b

    keys = jax.random.split(key, 6)
    aw1, ab1 = linear(keys[0], state_dim, hidden)
    aw2, ab2 = linear(keys[1], hidden, hidden)
    aw3, ab3 = linear(keys[2], hidden, action_dim)
    cw1, cb1 = linear(keys[3], state_dim, hidden)
    cw2, cb2 = linear(keys[4], hidden, hidden)
    cw3, cb3 = linear(keys[5], hidden, 1)
    return dict(
        aw1=aw1, ab1=ab1, aw2=aw2, ab2=ab2, aw3=aw3, ab3=ab3,
        cw1=cw1, cb1=cb1, cw2=cw2, cb2=cb2, cw3=cw3, cb3=cb3,
    )


def pack_params(p):
    """Fuse actor/critic layers into 3 lane-dense matmul operands (bf16)."""
    state_dim = p["aw1"].shape[0]
    action_dim = p["aw3"].shape[1]
    out_w = _round_up(action_dim + 2, 128)   # logits | value | entropy | pad
    assert action_dim + 2 <= out_w

    w1 = jnp.concatenate([p["aw1"], p["cw1"]], axis=1)            # [S, 128]
    b1 = jnp.concatenate([p["ab1"], p["cb1"]], axis=1)            # [1, 128]

    w2 = jnp.zeros((FUSED_H, FUSED_H), jnp.float32)               # block-diag
    w2 = w2.at[:HIDDEN, :HIDDEN].set(p["aw2"])
    w2 = w2.at[HIDDEN:, HIDDEN:].set(p["cw2"])
    b2 = jnp.concatenate([p["ab2"], p["cb2"]], axis=1)            # [1, 128]

    w3 = jnp.zeros((FUSED_H, out_w), jnp.float32)
    w3 = w3.at[:HIDDEN, :action_dim].set(p["aw3"])
    w3 = w3.at[HIDDEN:, action_dim:action_dim + 1].set(p["cw3"])
    b3 = jnp.zeros((1, out_w), jnp.float32)
    b3 = b3.at[:, :action_dim].set(p["ab3"])
    b3 = b3.at[:, action_dim:action_dim + 1].set(p["cb3"])

    # matmul operands in bf16 (single-pass MXU); biases stay f32 (f32 epilogue)
    return dict(w1=w1.astype(jnp.bfloat16), b1=b1,
                w2=w2.astype(jnp.bfloat16), b2=b2,
                w3=w3.astype(jnp.bfloat16), b3=b3,
                state_dim=state_dim, action_dim=action_dim, out_w=out_w)


# ----------------------------------------------------------------------------
# act() / evaluate() glue on top of the kernel (Categorical bookkeeping)
# ----------------------------------------------------------------------------
def act(packed, state, sample_key):
    log_probs, values, _ = forward_all(state, packed)
    action = jax.random.categorical(sample_key, log_probs, axis=-1)       # [B]
    action_logprob = jnp.take_along_axis(
        log_probs, action[:, None], axis=-1)[:, 0]                        # [B]
    return action, action_logprob, values                                 # [B,1]


def evaluate(packed, state, action):
    log_probs, values, dist_entropy = forward_all(state, packed)
    action_logprobs = jnp.take_along_axis(
        log_probs, action[:, None], axis=-1)[:, 0]                        # [B]
    return action_logprobs, values, dist_entropy


# ----------------------------------------------------------------------------
if __name__ == "__main__":
    key = jax.random.PRNGKey(0)
    k_param, k_state, k_big, k_sample = jax.random.split(key, 4)

    B, state_dim, action_dim = 8, 32, 8
    raw = init_params(k_param, state_dim, action_dim)
    packed = pack_params(raw)
    state = jax.random.normal(k_state, (B, state_dim), jnp.float32)

    # forward (the Pallas hot path)
    log_probs, values, entropy = forward_all(state, packed)
    log_probs, values, entropy = jax.block_until_ready((log_probs, values, entropy))

    # act / evaluate built on the kernel outputs
    action, action_logprob, state_val = act(packed, state, k_sample)
    logp_a, vals, ent = evaluate(packed, state, action)
    jax.block_until_ready((action, action_logprob, state_val, logp_a, vals, ent))

    # --- references ---------------------------------------------------------
    def ref_forward_f32(x, p):
        h = jnp.tanh(x @ p["aw1"] + p["ab1"])
        h = jnp.tanh(h @ p["aw2"] + p["ab2"])
        logits = h @ p["aw3"] + p["ab3"]
        lp = jax.nn.log_softmax(logits, axis=-1)
        g = jnp.tanh(x @ p["cw1"] + p["cb1"])
        g = jnp.tanh(g @ p["cw2"] + p["cb2"])
        v = g @ p["cw3"] + p["cb3"]
        ent_ = -jnp.sum(jnp.exp(lp) * lp, axis=-1)
        return lp, v, ent_

    def ref_forward_bf16(x, p):
        # emulates the kernel's precision: bf16 matmul operands, f32 accumulate
        def lin(h, w, b):
            return jnp.dot(h.astype(jnp.bfloat16), w.astype(jnp.bfloat16),
                           preferred_element_type=jnp.float32) + b
        h = jnp.tanh(lin(x, p["aw1"], p["ab1"]))
        h = jnp.tanh(lin(h, p["aw2"], p["ab2"]))
        logits = lin(h, p["aw3"], p["ab3"])
        lp = jax.nn.log_softmax(logits, axis=-1)
        g = jnp.tanh(lin(x, p["cw1"], p["cb1"]))
        g = jnp.tanh(lin(g, p["cw2"], p["cb2"]))
        v = lin(g, p["cw3"], p["cb3"])
        ent_ = -jnp.sum(jnp.exp(lp) * lp, axis=-1)
        return lp, v, ent_

    assert log_probs.shape == (B, action_dim) and values.shape == (B, 1)
    assert entropy.shape == (B,)

    # tight check against a reference with matching (bf16-operand) precision
    rlp, rv, re = ref_forward_bf16(state, raw)
    assert jnp.allclose(log_probs, rlp, atol=2e-3, rtol=2e-3)
    assert jnp.allclose(values, rv, atol=2e-3, rtol=2e-3)
    assert jnp.allclose(entropy, re, atol=3e-2, rtol=3e-2)

    # loose check against the full-f32 PyTorch-equivalent reference
    flp, fv, fe = ref_forward_f32(state, raw)
    assert jnp.allclose(log_probs, flp, atol=1e-1, rtol=1e-1)
    assert jnp.allclose(values, fv, atol=1e-1, rtol=1e-1)
    assert jnp.allclose(jnp.sum(jnp.exp(log_probs), axis=-1), 1.0, atol=1e-3)

    # exercise the large-batch path: ragged last block, >=2 grid steps
    big_state = jax.random.normal(k_big, (1000, state_dim), jnp.float32)
    lp_big, v_big, ent_big = forward_all(big_state, packed)   # TB=504, grid=(2,)
    jax.block_until_ready((lp_big, v_big, ent_big))
    rlp_b, rv_b, re_b = ref_forward_bf16(big_state, raw)
    assert lp_big.shape == (1000, action_dim) and v_big.shape == (1000, 1)
    assert jnp.allclose(lp_big, rlp_b, atol=2e-3, rtol=2e-3)
    assert jnp.allclose(v_big, rv_b, atol=2e-3, rtol=2e-3)
    assert jnp.allclose(ent_big, re_b, atol=3e-2, rtol=3e-2)

    # also exercise a smaller tile so multiple ragged blocks are covered
    lp_s, v_s, _ = forward_all(big_state, packed, block_b=256)  # grid=(4,)
    jax.block_until_ready((lp_s, v_s))
    assert jnp.allclose(lp_s, rlp_b, atol=2e-3, rtol=2e-3)
    assert jnp.allclose(v_s, rv_b, atol=2e-3, rtol=2e-3)

    print("KERNEL_OK")
</pallas_src>

<mosaic_0001>
module attributes {stable_mosaic.version = 11 : i64} {
  func.func @actor_critic_kernel(%arg0: i32, %arg1: memref<8x32xbf16, #tpu.memory_space<vmem>>, %arg2: memref<32x128xbf16, #tpu.memory_space<vmem>>, %arg3: memref<1x128xf32, #tpu.memory_space<vmem>>, %arg4: memref<128x128xbf16, #tpu.memory_space<vmem>>, %arg5: memref<1x128xf32, #tpu.memory_space<vmem>>, %arg6: memref<128x128xbf16, #tpu.memory_space<vmem>>, %arg7: memref<1x128xf32, #tpu.memory_space<vmem>>, %arg8: memref<8x128xf32, #tpu.memory_space<vmem>>) attributes {dimension_semantics = [#tpu.dimension_semantics<parallel>], iteration_bounds = array<i64: 1>, scalar_prefetch = 0 : i64, scratch_operands = 0 : i64, tpu.core_type = #tpu.core_type<tc>, window_params = [{transform_indices = @transform_0, window_bounds = array<i64: 8, 32>}, {pipeline_mode = #tpu.pipeline_mode<synchronous>, transform_indices = @transform_1, window_bounds = array<i64: 32, 128>}, {pipeline_mode = #tpu.pipeline_mode<synchronous>, transform_indices = @transform_2, window_bounds = array<i64: 1, 128>}, {pipeline_mode = #tpu.pipeline_mode<synchronous>, transform_indices = @transform_3, window_bounds = array<i64: 128, 128>}, {pipeline_mode = #tpu.pipeline_mode<synchronous>, transform_indices = @transform_4, window_bounds = array<i64: 1, 128>}, {pipeline_mode = #tpu.pipeline_mode<synchronous>, transform_indices = @transform_5, window_bounds = array<i64: 128, 128>}, {pipeline_mode = #tpu.pipeline_mode<synchronous>, transform_indices = @transform_6, window_bounds = array<i64: 1, 128>}, {transform_indices = @transform_7, window_bounds = array<i64: 8, 128>}]} {
    %c0 = arith.constant 0 : index
    %c0_0 = arith.constant 0 : index
    %0 = vector.load %arg1[%c0, %c0_0] : memref<8x32xbf16, #tpu.memory_space<vmem>>, vector<8x32xbf16>
    %c0_1 = arith.constant 0 : index
    %c0_2 = arith.constant 0 : index
    %1 = vector.load %arg2[%c0_1, %c0_2] : memref<32x128xbf16, #tpu.memory_space<vmem>>, vector<32x128xbf16>
    %cst = arith.constant dense<0.000000e+00> : vector<8x128xf32>
    %2 = tpu.matmul %0, %1, %cst {dimension_numbers = #tpu.dot_dimension_numbers<[1], [0], [0], [1], [0, 0, 1, 1], [], []>} : vector<8x32xbf16>, vector<32x128xbf16>, vector<8x128xf32> -> vector<8x128xf32>
    %c0_3 = arith.constant 0 : index
    %c0_4 = arith.constant 0 : index
    %3 = vector.load %arg3[%c0_3, %c0_4] : memref<1x128xf32, #tpu.memory_space<vmem>>, vector<1x128xf32>
    %4 = vector.broadcast %3 : vector<1x128xf32> to vector<8x128xf32>
    %5 = arith.addf %2, %4 : vector<8x128xf32>
    %6 = math.tanh %5 : vector<8x128xf32>
    %7 = arith.truncf %6 : vector<8x128xf32> to vector<8x128xbf16>
    %c0_5 = arith.constant 0 : index
    %c0_6 = arith.constant 0 : index
    %8 = vector.load %arg4[%c0_5, %c0_6] : memref<128x128xbf16, #tpu.memory_space<vmem>>, vector<128x128xbf16>
    %cst_7 = arith.constant dense<0.000000e+00> : vector<8x128xf32>
    %9 = tpu.matmul %7, %8, %cst_7 {dimension_numbers = #tpu.dot_dimension_numbers<[1], [0], [0], [1], [0, 0, 1, 1], [], []>} : vector<8x128xbf16>, vector<128x128xbf16>, vector<8x128xf32> -> vector<8x128xf32>
    %c0_8 = arith.constant 0 : index
    %c0_9 = arith.constant 0 : index
    %10 = vector.load %arg5[%c0_8, %c0_9] : memref<1x128xf32, #tpu.memory_space<vmem>>, vector<1x128xf32>
    %11 = vector.broadcast %10 : vector<1x128xf32> to vector<8x128xf32>
    %12 = arith.addf %9, %11 : vector<8x128xf32>
    %13 = math.tanh %12 : vector<8x128xf32>
    %14 = arith.truncf %13 : vector<8x128xf32> to vector<8x128xbf16>
    %c0_10 = arith.constant 0 : index
    %c0_11 = arith.constant 0 : index
    %15 = vector.load %arg6[%c0_10, %c0_11] : memref<128x128xbf16, #tpu.memory_space<vmem>>, vector<128x128xbf16>
    %cst_12 = arith.constant dense<0.000000e+00> : vector<8x128xf32>
    %16 = tpu.matmul %14, %15, %cst_12 {dimension_numbers = #tpu.dot_dimension_numbers<[1], [0], [0], [1], [0, 0, 1, 1], [], []>} : vector<8x128xbf16>, vector<128x128xbf16>, vector<8x128xf32> -> vector<8x128xf32>
    %c0_13 = arith.constant 0 : index
    %c0_14 = arith.constant 0 : index
    %17 = vector.load %arg7[%c0_13, %c0_14] : memref<1x128xf32, #tpu.memory_space<vmem>>, vector<1x128xf32>
    %18 = vector.broadcast %17 : vector<1x128xf32> to vector<8x128xf32>
    %19 = arith.addf %16, %18 : vector<8x128xf32>
    %20 = tpu.iota {dimensions = array<i32: 1>} : vector<8x128xi32>
    %c8_i32 = arith.constant 8 : i32
    %21 = vector.broadcast %c8_i32 : i32 to vector<8x128xi32>
    %22 = arith.cmpi slt, %20, %21 : vector<8x128xi32>
    %cst_15 = arith.constant -1.000000e+30 : f32
    %23 = vector.broadcast %cst_15 : f32 to vector<8x128xf32>
    %24 = arith.select %22, %19, %23 : vector<8x128xi1>, vector<8x128xf32>
    %cst_16 = arith.constant dense<0xFF800000> : vector<8xf32>
    %25 = vector.multi_reduction <maximumf>, %24, %cst_16 [1] : vector<8x128xf32> to vector<8xf32>
    %26 = vector.shape_cast %25 : vector<8xf32> to vector<8x1xf32>
    %27 = vector.broadcast %26 : vector<8x1xf32> to vector<8x128xf32>
    %28 = arith.subf %24, %27 : vector<8x128xf32>
    %29 = math.exp %28 : vector<8x128xf32>
    %cst_17 = arith.constant dense<0.000000e+00> : vector<8xf32>
    %30 = vector.multi_reduction <add>, %29, %cst_17 [1] : vector<8x128xf32> to vector<8xf32>
    %31 = vector.shape_cast %30 : vector<8xf32> to vector<8x1xf32>
    %32 = vector.broadcast %26 : vector<8x1xf32> to vector<8x128xf32>
    %33 = arith.subf %24, %32 : vector<8x128xf32>
    %34 = math.log %31 : vector<8x1xf32>
    %35 = vector.broadcast %34 : vector<8x1xf32> to vector<8x128xf32>
    %36 = arith.subf %33, %35 : vector<8x128xf32>
    %37 = tpu.reciprocal %31 {approx = true} : vector<8x1xf32> -> vector<8x1xf32>
    %38 = vector.broadcast %37 : vector<8x1xf32> to vector<8x128xf32>
    %39 = arith.mulf %29, %38 : vector<8x128xf32>
    %40 = arith.mulf %39, %36 : vector<8x128xf32>
    %cst_18 = arith.constant 0.000000e+00 : f32
    %41 = vector.broadcast %cst_18 : f32 to vector<8x128xf32>
    %42 = arith.select %22, %40, %41 : vector<8x128xi1>, vector<8x128xf32>
    %cst_19 = arith.constant dense<0.000000e+00> : vector<8xf32>
    %43 = vector.multi_reduction <add>, %42, %cst_19 [1] : vector<8x128xf32> to vector<8xf32>
    %44 = vector.shape_cast %43 : vector<8xf32> to vector<8x1xf32>
    %cst_20 = arith.constant 0.000000e+00 : f32
    %45 = vector.broadcast %cst_20 : f32 to vector<8x1xf32>
    %46 = arith.subf %45, %44 : vector<8x1xf32>
    %47 = arith.select %22, %36, %19 : vector<8x128xi1>, vector<8x128xf32>
    %c9_i32 = arith.constant 9 : i32
    %48 = vector.broadcast %c9_i32 : i32 to vector<8x128xi32>
    %49 = arith.cmpi eq, %20, %48 : vector<8x128xi32>
    %50 = vector.shape_cast %46 : vector<8x1xf32> to vector<8x1xf32>
    %51 = vector.broadcast %50 : vector<8x1xf32> to vector<8x128xf32>
    %52 = arith.select %49, %51, %47 : vector<8x128xi1>, vector<8x128xf32>
    %c0_21 = arith.constant 0 : index
    %c0_22 = arith.constant 0 : index
    %53 = vector.load %arg8[%c0_21, %c0_22] : memref<8x128xf32, #tpu.memory_space<vmem>>, vector<8x128xf32>
    tpu.vector_store %arg8[%c0_21, %c0_22], %52 {strides = array<i32>} : memref<8x128xf32, #tpu.memory_space<vmem>>, vector<8x128xf32>,
    return
  }
  func.func @transform_0(%arg0: i32) -> (i32, i32) {
    %c0_i32 = arith.constant 0 : i32
    %c0_i32_0 = arith.constant 0 : i32
    return %arg0, %c0_i32 : i32, i32
  }
  func.func @transform_1(%arg0: i32) -> (i32, i32) {
    %c0_i32 = arith.constant 0 : i32
    %c0_i32_0 = arith.constant 0 : i32
    %c0_i32_1 = arith.constant 0 : i32
    return %c0_i32, %c0_i32_0 : i32, i32
  }
  func.func @transform_2(%arg0: i32) -> (i32, i32) {
    %c0_i32 = arith.constant 0 : i32
    %c0_i32_0 = arith.constant 0 : i32
    %c0_i32_1 = arith.constant 0 : i32
    return %c0_i32, %c0_i32_0 : i32, i32
  }
  func.func @transform_3(%arg0: i32) -> (i32, i32) {
    %c0_i32 = arith.constant 0 : i32
    %c0_i32_0 = arith.constant 0 : i32
    %c0_i32_1 = arith.constant 0 : i32
    return %c0_i32, %c0_i32_0 : i32, i32
  }
  func.func @transform_4(%arg0: i32) -> (i32, i32) {
    %c0_i32 = arith.constant 0 : i32
    %c0_i32_0 = arith.constant 0 : i32
    %c0_i32_1 = arith.constant 0 : i32
    return %c0_i32, %c0_i32_0 : i32, i32
  }
  func.func @transform_5(%arg0: i32) -> (i32, i32) {
    %c0_i32 = arith.constant 0 : i32
    %c0_i32_0 = arith.constant 0 : i32
    %c0_i32_1 = arith.constant 0 : i32
    return %c0_i32, %c0_i32_0 : i32, i32
  }
  func.func @transform_6(%arg0: i32) -> (i32, i32) {
    %c0_i32 = arith.constant 0 : i32
    %c0_i32_0 = arith.constant 0 : i32
    %c0_i32_1 = arith.constant 0 : i32
    return %c0_i32, %c0_i32_0 : i32, i32
  }
  func.func @transform_7(%arg0: i32) -> (i32, i32) {
    %c0_i32 = arith.constant 0 : i32
    %c0_i32_0 = arith.constant 0 : i32
    return %arg0, %c0_i32 : i32, i32
  }
}

</mosaic_0001>

<llo_original>
// kernel: tpu_custom_call.1
$region0: #{tpu_custom_call.1}
  #allocation0 [shape = 'u32[]', space=smem, size = 0x4, offset = 0x4, fixed_abs, tag = 'smem constant byte address 0x4 - core index']
  #allocation1 [shape = 'u32[144,128]{1,0:T(1,128)}', space=vmem, size = 0x12000, scoped, tag = 'internal scratch']
  %s0 = inlined_call_operand.hbm [shape: bf16[8,32], index: 0, kind: input, shape index: {}]
  %s1 = inlined_call_operand.hbm [shape: bf16[32,128], index: 1, kind: input, shape index: {}]
  %s2 = inlined_call_operand.vmem [shape: f32[1,128], index: 2, kind: input, shape index: {}]
  %s3 = inlined_call_operand.hbm [shape: bf16[128,128], index: 3, kind: input, shape index: {}]
  %s4 = inlined_call_operand.vmem [shape: f32[1,128], index: 4, kind: input, shape index: {}]
  %s5 = inlined_call_operand.hbm [shape: bf16[128,128], index: 5, kind: input, shape index: {}]
  %s6 = inlined_call_operand.vmem [shape: f32[1,128], index: 6, kind: input, shape index: {}]
  %s7 = inlined_call_operand.hbm [shape: f32[8,128], index: 7, kind: output, shape index: {}]
  %s8 = sld [smem:[#allocation0]]
  $region54: #{tpu_custom_call.1} parent=0
    _
  %s10 = ssub.s32 1, %s8
  %s11 = scalar_select 0, %s10, %s8
  $region1: #{tpu_custom_call.1} parent=0
    #allocation2 [shape = 'u8[2048]{0}', space=vmem, size = 0x800, scoped, tag = 'input window, operand 0, single buffered']
    #allocation3 [shape = 's32[1]{0}', space=sflag, size = 0x4, scoped, tag = 'scoped memory for tpu_custom_call.1']
    #allocation4 [shape = 's32[1]{0}', space=sflag, size = 0x4, scoped, tag = 'scoped memory for tpu_custom_call.1']
    #allocation5 [shape = 'u8[8192]{0}', space=vmem, size = 0x2000, scoped, tag = 'input window, operand 1, single buffered']
    #allocation6 [shape = 's32[1]{0}', space=sflag, size = 0x4, scoped, tag = 'scoped memory for tpu_custom_call.1']
    #allocation7 [shape = 'u8[32768]{0}', space=vmem, size = 0x8000, scoped, tag = 'input window, operand 3, single buffered']
    #allocation8 [shape = 'u8[32768]{0}', space=vmem, size = 0x8000, scoped, tag = 'input window, operand 5, single buffered']
    #allocation9 [shape = 's32[1]{0}', space=sflag, size = 0x4, scoped, tag = 'scoped memory for tpu_custom_call.1']
    #allocation10 [shape = 'u8[4096]{0}', space=vmem, size = 0x1000, scoped, tag = 'output window, operand 0, single buffered']
    %12 = vsyncpa [#allocation3], 0
    %13 = vsyncpa [#allocation6], 0
    %14 = vsyncpa [#allocation9], 0
    %15 = vsyncpa [#allocation4], 0
    // Predicated region
    $region2: #{tpu_custom_call.1} parent=1 // pred_check
      _
    $region3: #{tpu_custom_call.1} parent=1 // pred_check_branch
      %17 = sbr.rel (0) target = $region5
    $region4: #{tpu_custom_call.1} parent=1 // pred_region
      %s19 = ssub.s32 64, 64
      %20 = vsyncadd [#allocation3], %s19
      %s22 = sshll.u32 [#allocation2], 4
      %s23 = int_to_ptr.vmem [resolvable:$true] %s22
      %25 = dma.hbm_to_vmem [thread:$0]  %s0, 64, %s23, [#allocation3]
    $region5: #{tpu_custom_call.1} parent=1 // pred_fallthru
      _
    // Predicated region
    $region6: #{tpu_custom_call.1} parent=1 // pred_check
      _
    $region7: #{tpu_custom_call.1} parent=1 // pred_check_branch
      %27 = sbr.rel (0) target = $region9
    $region8: #{tpu_custom_call.1} parent=1 // pred_region
      %s29 = ssub.s32 256, 256
      %30 = vsyncadd [#allocation6], %s29
      %s31 = sshll.u32 [#allocation5], 4
      %s32 = int_to_ptr.vmem [resolvable:$true] %s31
      %37 = dma.hbm_to_vmem [thread:$0]  %s1, 256, %s32, [#allocation6], 64, 64, 4
    $region9: #{tpu_custom_call.1} parent=1 // pred_fallthru
      _
    // Predicated region
    $region10: #{tpu_custom_call.1} parent=1 // pred_check
      _
    $region11: #{tpu_custom_call.1} parent=1 // pred_check_branch
      %39 = sbr.rel (0) target = $region13
    $region12: #{tpu_custom_call.1} parent=1 // pred_region
      _
    $region13: #{tpu_custom_call.1} parent=1 // pred_fallthru
      _
    // Predicated region
    $region14: #{tpu_custom_call.1} parent=1 // pred_check
      _
    $region15: #{tpu_custom_call.1} parent=1 // pred_check_branch
      %41 = sbr.rel (0) target = $region17
    $region16: #{tpu_custom_call.1} parent=1 // pred_region
      %s43 = ssub.s32 1024, 1024
      %44 = vsyncadd [#allocation6], %s43
      %s45 = sshll.u32 [#allocation7], 4
      %s46 = int_to_ptr.vmem [resolvable:$true] %s45
      %51 = dma.hbm_to_vmem [thread:$0]  %s3, 1024, %s46, [#allocation6], 64, 64, 4
    $region17: #{tpu_custom_call.1} parent=1 // pred_fallthru
      _
    // Predicated region
    $region18: #{tpu_custom_call.1} parent=1 // pred_check
      _
    $region19: #{tpu_custom_call.1} parent=1 // pred_check_branch
      %53 = sbr.rel (0) target = $region21
    $region20: #{tpu_custom_call.1} parent=1 // pred_region
      _
    $region21: #{tpu_custom_call.1} parent=1 // pred_fallthru
      _
    // Predicated region
    $region22: #{tpu_custom_call.1} parent=1 // pred_check
      _
    $region23: #{tpu_custom_call.1} parent=1 // pred_check_branch
      %55 = sbr.rel (0) target = $region25
    $region24: #{tpu_custom_call.1} parent=1 // pred_region
      %s57 = ssub.s32 1024, 1024
      %58 = vsyncadd [#allocation9], %s57
      %s59 = sshll.u32 [#allocation8], 4
      %s60 = int_to_ptr.vmem [resolvable:$true] %s59
      %65 = dma.hbm_to_vmem [thread:$0]  %s5, 1024, %s60, [#allocation9], 64, 64, 4
    $region25: #{tpu_custom_call.1} parent=1 // pred_fallthru
      _
    // Predicated region
    $region26: #{tpu_custom_call.1} parent=1 // pred_check
      _
    $region27: #{tpu_custom_call.1} parent=1 // pred_check_branch
      %67 = sbr.rel (0) target = $region29
    $region28: #{tpu_custom_call.1} parent=1 // pred_region
      _
    $region29: #{tpu_custom_call.1} parent=1 // pred_fallthru
      _
    // Predicated region
    $region30: #{tpu_custom_call.1} parent=1 // pred_check
      _
    $region31: #{tpu_custom_call.1} parent=1 // pred_check_branch
      %69 = sbr.rel (0) target = $region33
    $region32: #{tpu_custom_call.1} parent=1 // pred_region
      %70 = dma.done [#allocation3], 64
    $region33: #{tpu_custom_call.1} parent=1 // pred_fallthru
      _
    // Predicated region
    $region34: #{tpu_custom_call.1} parent=1 // pred_check
      _
    $region35: #{tpu_custom_call.1} parent=1 // pred_check_branch
      %72 = sbr.rel (0) target = $region37
    $region36: #{tpu_custom_call.1} parent=1 // pred_region
      %73 = dma.done [#allocation6], 256
    $region37: #{tpu_custom_call.1} parent=1 // pred_fallthru
      _
    // Predicated region
    $region38: #{tpu_custom_call.1} parent=1 // pred_check
      _
    $region39: #{tpu_custom_call.1} parent=1 // pred_check_branch
      %75 = sbr.rel (0) target = $region41
    $region40: #{tpu_custom_call.1} parent=1 // pred_region
      %76 = dma.done [#allocation6], 1024
    $region41: #{tpu_custom_call.1} parent=1 // pred_fallthru
      _
    // Predicated region
    $region42: #{tpu_custom_call.1} parent=1 // pred_check
      _
    $region43: #{tpu_custom_call.1} parent=1 // pred_check_branch
      %78 = sbr.rel (0) target = $region45
    $region44: #{tpu_custom_call.1} parent=1 // pred_region
      %79 = dma.done [#allocation9], 1024
    $region45: #{tpu_custom_call.1} parent=1 // pred_fallthru
      _
    %v81 = vld [vmem:[#allocation2] sm:$0xf]
    %v82 = vld [vmem:[#allocation5] sm:$0xf]
    %v83 = vld [vmem:[#allocation5 + $0x4] sm:$0xf]
    %v84 = vld [vmem:[#allocation5 + $0x8] sm:$0xf]
    %v85 = vld [vmem:[#allocation5 + $0xc] sm:$0xf]
    %v86 = vld [vmem:[%s2] sm:$0x1]
    %v88 = vlaneseq
    %v89 = vshrl.u32 %v88, 7
    %v90 = vsub.s32 0, %v89
    %v91 = vrot.slane %v86, %v90
    %v97 = vunpack.c.l.b16 %v82
    %v98 = vunpack.c.l.b16 %v83
    %v99 = vunpack.c.l.b16 %v84
    %v100 = vunpack.c.l.b16 %v85
    %v101 = vpack.c.b16 %v98, %v97
    %v102 = vpack.c.b16 %v100, %v99
    %vm105 = vcmask 261120
    %v107 = vsel %vm105, %v81, 0
    %109 = vmatprep.subr.bf16.mxu0 0
    %110 = vmatpush1.bf16.msra.mxu0 %v101
    %111 = vmatprep.subr.bf16.mxu0 0
    %112 = vmatpush1.bf16.msra.mxu0 %v102
    %113 = vmatprep.subr.bf16.mxu0 0
    %114 = vmatpush1.bf16.msra.mxu0 0
    %115 = vmatprep.subr.bf16.mxu0 0
    %116 = vmatpush1.bf16.msra.mxu0 0
    %117 = vmatprep.subr.bf16.mxu0 0
    %118 = vmatpush1.bf16.msra.mxu0 0
    %119 = vmatprep.subr.bf16.mxu0 0
    %120 = vmatpush1.bf16.msra.mxu0 0
    %121 = vmatprep.subr.bf16.mxu0 0
    %122 = vmatpush1.bf16.msra.mxu0 0
    %123 = vmatprep.subr.bf16.mxu0 0
    %124 = vmatpush1.bf16.msra.mxu0 0
    %125 = vmatprep.subr.bf16.mxu0 0
    %126 = vmatpush1.bf16.msra.mxu0 0
    %127 = vmatprep.subr.bf16.mxu0 0
    %128 = vmatpush1.bf16.msra.mxu0 0
    %129 = vmatprep.subr.bf16.mxu0 0
    %130 = vmatpush1.bf16.msra.mxu0 0
    %131 = vmatprep.subr.bf16.mxu0 0
    %132 = vmatpush1.bf16.msra.mxu0 0
    %133 = vmatprep.subr.bf16.mxu0 0
    %134 = vmatpush1.bf16.msra.mxu0 0
    %135 = vmatprep.subr.bf16.mxu0 0
    %136 = vmatpush1.bf16.msra.mxu0 0
    %137 = vmatprep.subr.bf16.mxu0 0
    %138 = vmatpush1.bf16.msra.mxu0 0
    %139 = vmatprep.subr.bf16.mxu0 0
    %140 = vmatpush1.bf16.msra.mxu0 0
    %141 = vmatprep.mubr.bf16.mxu0 0
    %142 = vmatmul.mubr.bf16.gmra.mrb[0].mxu0 %v107
    %v143 = vpop.f32.mrb[0].mxu0
    %v144 = vadd.f32 %v91, %v143
    %v145 = vpop.f32.mrb[0].mxu0
    %v146 = vpop.f32.mrb[0].mxu0
    %v147 = vpop.f32.mrb[0].mxu0
    %148 = vdwg.mxu0
    %v149 = vtanh.pop %v144
    %v150 = vpack.c.bf16 %v149, %v149
    %v151 = vld [vmem:[#allocation7] sm:$0xf]
    %v152 = vld [vmem:[#allocation7 + $0x4] sm:$0xf]
    %v153 = vld [vmem:[#allocation7 + $0x8] sm:$0xf]
    %v154 = vld [vmem:[#allocation7 + $0xc] sm:$0xf]
    %v155 = vld [vmem:[#allocation7 + $0x10] sm:$0xf]
    %v156 = vld [vmem:[#allocation7 + $0x14] sm:$0xf]
    %v157 = vld [vmem:[#allocation7 + $0x18] sm:$0xf]
    %v158 = vld [vmem:[#allocation7 + $0x1c] sm:$0xf]
    %v159 = vld [vmem:[#allocation7 + $0x20] sm:$0xf]
    %v160 = vld [vmem:[#allocation7 + $0x24] sm:$0xf]
    %v161 = vld [vmem:[#allocation7 + $0x28] sm:$0xf]
    %v162 = vld [vmem:[#allocation7 + $0x2c] sm:$0xf]
    %v163 = vld [vmem:[#allocation7 + $0x30] sm:$0xf]
    %v164 = vld [vmem:[#allocation7 + $0x34] sm:$0xf]
    %v165 = vld [vmem:[#allocation7 + $0x38] sm:$0xf]
    %v166 = vld [vmem:[#allocation7 + $0x3c] sm:$0xf]
    %v167 = vld [vmem:[%s4] sm:$0x1]
    %v169 = vlaneseq
    %v170 = vshrl.u32 %v169, 7
    %v171 = vsub.s32 0, %v170
    %v172 = vrot.slane %v167, %v171
    %v190 = vunpack.c.l.b16 %v151
    %v191 = vunpack.c.l.b16 %v152
    %v192 = vunpack.c.l.b16 %v153
    %v193 = vunpack.c.l.b16 %v154
    %v194 = vunpack.c.l.b16 %v155
    %v195 = vunpack.c.l.b16 %v156
    %v196 = vunpack.c.l.b16 %v157
    %v197 = vunpack.c.l.b16 %v158
    %v198 = vunpack.c.l.b16 %v159
    %v199 = vunpack.c.l.b16 %v160
    %v200 = vunpack.c.l.b16 %v161
    %v201 = vunpack.c.l.b16 %v162
    %v202 = vunpack.c.l.b16 %v163
    %v203 = vunpack.c.l.b16 %v164
    %v204 = vunpack.c.l.b16 %v165
    %v205 = vunpack.c.l.b16 %v166
    %v206 = vpack.c.b16 %v191, %v190
    %v207 = vpack.c.b16 %v193, %v192
    %v208 = vpack.c.b16 %v195, %v194
    %v209 = vpack.c.b16 %v197, %v196
    %v210 = vpack.c.b16 %v199, %v198
    %v211 = vpack.c.b16 %v201, %v200
    %v212 = vpack.c.b16 %v203, %v202
    %v213 = vpack.c.b16 %v205, %v204
    %222 = vmatprep.subr.bf16.mxu0 0
    %223 = vmatpush1.bf16.msra.mxu0 %v206
    %224 = vmatprep.subr.bf16.mxu0 0
    %225 = vmatpush1.bf16.msra.mxu0 %v207
    %226 = vmatprep.subr.bf16.mxu0 0
    %227 = vmatpush1.bf16.msra.mxu0 %v208
    %228 = vmatprep.subr.bf16.mxu0 0
    %229 = vmatpush1.bf16.msra.mxu0 %v209
    %230 = vmatprep.subr.bf16.mxu0 0
    %231 = vmatpush1.bf16.msra.mxu0 %v210
    %232 = vmatprep.subr.bf16.mxu0 0
    %233 = vmatpush1.bf16.msra.mxu0 %v211
    %234 = vmatprep.subr.bf16.mxu0 0
    %235 = vmatpush1.bf16.msra.mxu0 %v212
    %236 = vmatprep.subr.bf16.mxu0 0
    %237 = vmatpush1.bf16.msra.mxu0 %v213
    %238 = vmatprep.subr.bf16.mxu0 0
    %239 = vmatpush1.bf16.msra.mxu0 0
    %240 = vmatprep.subr.bf16.mxu0 0
    %241 = vmatpush1.bf16.msra.mxu0 0
    %242 = vmatprep.subr.bf16.mxu0 0
    %243 = vmatpush1.bf16.msra.mxu0 0
    %244 = vmatprep.subr.bf16.mxu0 0
    %245 = vmatpush1.bf16.msra.mxu0 0
    %246 = vmatprep.subr.bf16.mxu0 0
    %247 = vmatpush1.bf16.msra.mxu0 0
    %248 = vmatprep.subr.bf16.mxu0 0
    %249 = vmatpush1.bf16.msra.mxu0 0
    %250 = vmatprep.subr.bf16.mxu0 0
    %251 = vmatpush1.bf16.msra.mxu0 0
    %252 = vmatprep.subr.bf16.mxu0 0
    %253 = vmatpush1.bf16.msra.mxu0 0
    %254 = vmatprep.mubr.bf16.mxu0 0
    %255 = vmatmul.mubr.bf16.gmra.mrb[0].mxu0 %v150
    %v256 = vpop.f32.mrb[0].mxu0
    %v257 = vadd.f32 %v172, %v256
    %v258 = vpop.f32.mrb[0].mxu0
    %v259 = vpop.f32.mrb[0].mxu0
    %v260 = vpop.f32.mrb[0].mxu0
    %261 = vdwg.mxu0
    %v262 = vtanh.pop %v257
    %v263 = vpack.c.bf16 %v262, %v262
    %v264 = vld [vmem:[#allocation8] sm:$0xf]
    %v265 = vld [vmem:[#allocation8 + $0x4] sm:$0xf]
    %v266 = vld [vmem:[#allocation8 + $0x8] sm:$0xf]
    %v267 = vld [vmem:[#allocation8 + $0xc] sm:$0xf]
    %v268 = vld [vmem:[#allocation8 + $0x10] sm:$0xf]
    %v269 = vld [vmem:[#allocation8 + $0x14] sm:$0xf]
    %v270 = vld [vmem:[#allocation8 + $0x18] sm:$0xf]
    %v271 = vld [vmem:[#allocation8 + $0x1c] sm:$0xf]
    %v272 = vld [vmem:[#allocation8 + $0x20] sm:$0xf]
    %v273 = vld [vmem:[#allocation8 + $0x24] sm:$0xf]
    %v274 = vld [vmem:[#allocation8 + $0x28] sm:$0xf]
    %v275 = vld [vmem:[#allocation8 + $0x2c] sm:$0xf]
    %v276 = vld [vmem:[#allocation8 + $0x30] sm:$0xf]
    %v277 = vld [vmem:[#allocation8 + $0x34] sm:$0xf]
    %v278 = vld [vmem:[#allocation8 + $0x38] sm:$0xf]
    %v279 = vld [vmem:[#allocation8 + $0x3c] sm:$0xf]
    %v280 = vld [vmem:[%s6] sm:$0x1]
    %v282 = vlaneseq
    %v283 = vshrl.u32 %v282, 7
    %v284 = vsub.s32 0, %v283
    %v285 = vrot.slane %v280, %v284
    %v303 = vunpack.c.l.b16 %v264
    %v304 = vunpack.c.l.b16 %v265
    %v305 = vunpack.c.l.b16 %v266
    %v306 = vunpack.c.l.b16 %v267
    %v307 = vunpack.c.l.b16 %v268
    %v308 = vunpack.c.l.b16 %v269
    %v309 = vunpack.c.l.b16 %v270
    %v310 = vunpack.c.l.b16 %v271
    %v311 = vunpack.c.l.b16 %v272
    %v312 = vunpack.c.l.b16 %v273
    %v313 = vunpack.c.l.b16 %v274
    %v314 = vunpack.c.l.b16 %v275
    %v315 = vunpack.c.l.b16 %v276
    %v316 = vunpack.c.l.b16 %v277
    %v317 = vunpack.c.l.b16 %v278
    %v318 = vunpack.c.l.b16 %v279
    %v319 = vpack.c.b16 %v304, %v303
    %v320 = vpack.c.b16 %v306, %v305
    %v321 = vpack.c.b16 %v308, %v307
    %v322 = vpack.c.b16 %v310, %v309
    %v323 = vpack.c.b16 %v312, %v311
    %v324 = vpack.c.b16 %v314, %v313
    %v325 = vpack.c.b16 %v316, %v315
    %v326 = vpack.c.b16 %v318, %v317
    %335 = vmatprep.subr.bf16.mxu0 0
    %336 = vmatpush1.bf16.msra.mxu0 %v319
    %337 = vmatprep.subr.bf16.mxu0 0
    %338 = vmatpush1.bf16.msra.mxu0 %v320
    %339 = vmatprep.subr.bf16.mxu0 0
    %340 = vmatpush1.bf16.msra.mxu0 %v321
    %341 = vmatprep.subr.bf16.mxu0 0
    %342 = vmatpush1.bf16.msra.mxu0 %v322
    %343 = vmatprep.subr.bf16.mxu0 0
    %344 = vmatpush1.bf16.msra.mxu0 %v323
    %345 = vmatprep.subr.bf16.mxu0 0
    %346 = vmatpush1.bf16.msra.mxu0 %v324
    %347 = vmatprep.subr.bf16.mxu0 0
    %348 = vmatpush1.bf16.msra.mxu0 %v325
    %349 = vmatprep.subr.bf16.mxu0 0
    %350 = vmatpush1.bf16.msra.mxu0 %v326
    %351 = vmatprep.subr.bf16.mxu0 0
    %352 = vmatpush1.bf16.msra.mxu0 0
    %353 = vmatprep.subr.bf16.mxu0 0
    %354 = vmatpush1.bf16.msra.mxu0 0
    %355 = vmatprep.subr.bf16.mxu0 0
    %356 = vmatpush1.bf16.msra.mxu0 0
    %357 = vmatprep.subr.bf16.mxu0 0
    %358 = vmatpush1.bf16.msra.mxu0 0
    %359 = vmatprep.subr.bf16.mxu0 0
    %360 = vmatpush1.bf16.msra.mxu0 0
    %361 = vmatprep.subr.bf16.mxu0 0
    %362 = vmatpush1.bf16.msra.mxu0 0
    %363 = vmatprep.subr.bf16.mxu0 0
    %364 = vmatpush1.bf16.msra.mxu0 0
    %365 = vmatprep.subr.bf16.mxu0 0
    %366 = vmatpush1.bf16.msra.mxu0 0
    %367 = vmatprep.mubr.bf16.mxu0 0
    %368 = vmatmul.mubr.bf16.gmra.mrb[0].mxu0 %v263
    %v369 = vpop.f32.mrb[0].mxu0
    %v370 = vadd.f32 %v285, %v369
    %v371 = vpop.f32.mrb[0].mxu0
    %v372 = vpop.f32.mrb[0].mxu0
    %v373 = vpop.f32.mrb[0].mxu0
    %374 = vdwg.mxu0
    %v375 = vlaneseq
    %v376 = vand.u32 %v375, 127
    %vm377 = vcmp.lt.s32.totalorder %v376, 8
    %v378 = vsel %vm377, %v370, -1e+30
    %379 = vmax.xlane.f32.xlu0 %v378
    %v380 = vpop.xlane.xlu0 %379
    %v381 = vsub.f32 %v378, %v380
    %v382 = vmul.f32 %v381, 1.442695
    %v383 = vpow.pop %v382
    %384 = vadd.xlane.f32.xlu0 %v383
    %v385 = vpop.xlane.xlu0 %384
    %v386 = vlog2.pop %v385
    %v387 = vmul.f32 %v386, 0.6931472
    %v388 = vsub.f32 %v381, %v387
    %v389 = vrcp.pop %v385
    %v390 = vmul.f32 %v383, %v389
    %v391 = vmul.f32 %v390, %v388
    %v392 = vsel %vm377, %v391, 0.0
    %393 = vadd.xlane.f32.xlu0 %v392
    %v394 = vpop.xlane.xlu0 %393
    %v395 = vsub.f32 0.0, %v394
    %v396 = vsel %vm377, %v388, %v370
    %vm397 = vcmp.eq.s32.totalorder %v376, 9
    %v398 = vsel %vm397, %v395, %v396
    %399 = vst [vmem:[#allocation10] sm:$0xff] %v398
    // Predicated region
    $region46: #{tpu_custom_call.1} parent=1 // pred_check
      _
    $region47: #{tpu_custom_call.1} parent=1 // pred_check_branch
      %401 = sbr.rel (0) target = $region49
    $region48: #{tpu_custom_call.1} parent=1 // pred_region
      %s403 = ssub.s32 128, 128
      %404 = vsyncadd [#allocation4], %s403
      %s406 = sshll.u32 [#allocation10], 4
      %s407 = int_to_ptr.vmem [resolvable:$true] %s406
      %409 = dma.vmem_to_hbm [thread:$0]  %s407, 128, %s7, [#allocation4]
    $region49: #{tpu_custom_call.1} parent=1 // pred_fallthru
      _
    // Predicated region
    $region50: #{tpu_custom_call.1} parent=1 // pred_check
      _
    $region51: #{tpu_custom_call.1} parent=1 // pred_check_branch
      %411 = sbr.rel (0) target = $region53
    $region52: #{tpu_custom_call.1} parent=1 // pred_region
      %412 = dma.done [#allocation4], 128
    $region53: #{tpu_custom_call.1} parent=1 // pred_fallthru
      _
    %413 = vsyncpa [#allocation3], 1
    %414 = vsyncpa [#allocation6], 1
    %415 = vsyncpa [#allocation9], 1
    %416 = vsyncpa [#allocation4], 1

</llo_original>
